<compile_context>
chip_gen: v7x
topology: tpu7x:2x2x1
jax: 0.10.0
libtpu: 0.0.40
codegen_flags: <defaults>
</compile_context>

<pallas_src>
import functools

import jax
import jax.numpy as jnp
from jax import lax
from jax.experimental import pallas as pl
from jax.experimental.pallas import tpu as pltpu

LANES = 128
SUB_CHUNK = 64            # rows per inner-loop step (8 f32 vregs per input)
# exp(-1e4) == 0 exactly in f32; with target 0, a masked element contributes
# exactly 0 to sum(p+t), sum(p*t) and sum(bce).
PAD_LOGIT = -1.0e4


def _elementwise(x, t):
    """Per-element (p + t, p * t, bce) in f32, numerically stable."""
    e = jnp.exp(-jnp.abs(x))                       # shared EUP transcendental
    r = 1.0 / (1.0 + e)
    p = jnp.where(x >= 0.0, r, e * r)              # sigmoid(x)
    bce = jnp.maximum(x, 0.0) - x * t + jnp.log1p(e)
    return p + t, p * t, bce


def _dice_bce_kernel(x_ref, t_ref, out_ref, *, rows_total, steps_per_core,
                     block_rows, chunk, needs_mask):
    c = pl.program_id(0)
    j = pl.program_id(1)

    @pl.when(j == 0)
    def _():
        out_ref[...] = jnp.zeros_like(out_ref)

    blk = c * steps_per_core + j                   # logical (unclamped) block id
    n_chunks = block_rows // chunk

    def run(masked):
        def body(i, carry):
            s_pt, s_ppt, s_bce = carry
            r = pl.multiple_of(i * chunk, chunk)
            x = x_ref[pl.ds(r, chunk), :].astype(jnp.float32)
            t = t_ref[pl.ds(r, chunk), :].astype(jnp.float32)
            if masked:
                # Rows at/after rows_total carry garbage (partial-block DMA);
                # force neutral values that contribute exactly 0 to every sum.
                row = (blk * block_rows + i * chunk
                       + lax.broadcasted_iota(jnp.int32, (chunk, LANES), 0))
                keep = row < rows_total
                x = jnp.where(keep, x, PAD_LOGIT)
                t = jnp.where(keep, t, 0.0)
            pt, ppt, bce = _elementwise(x, t)

            def fold(a):
                # (chunk, 128) -> (8, 128): cross-vreg VPU adds only.
                return a.reshape(chunk // 8, 8, LANES).sum(axis=0)

            return s_pt + fold(pt), s_ppt + fold(ppt), s_bce + fold(bce)

        z = jnp.zeros((8, LANES), jnp.float32)
        s_pt, s_ppt, s_bce = lax.fori_loop(0, n_chunks, body, (z, z, z),
                                           unroll=min(2, n_chunks))
        # One small flush per grid step into the VMEM-resident output block.
        out_ref[0, 0] += s_pt
        out_ref[0, 1] += s_ppt
        out_ref[0, 2] += s_bce

    if needs_mask:
        full = (blk + 1) * block_rows <= rows_total

        @pl.when(full)
        def _():
            run(masked=False)          # hot path: no mask ops at all

        @pl.when(jnp.logical_not(full))
        def _():
            run(masked=True)           # cold path: partial / out-of-range block
    else:
        run(masked=False)


def _default_num_cores():
    """2 on multi-TensorCore chips (v4/v5p/v7x), 1 on single-TC v5e/v6e."""
    try:
        kind = jax.devices()[0].device_kind.lower()
    except Exception:
        return 2
    if "lite" in kind or "v5e" in kind or "v6e" in kind:
        return 1
    return 2


def dice_bce_loss(inputs, targets, smooth=1.0, *, block_rows=2048,
                  num_cores=None):
    """Dice + BCE-with-logits loss.

    inputs: logits, any shape / float dtype (bf16 recommended for bandwidth).
    targets: same shape, values in [0, 1].  Returns a scalar f32 loss.
    """
    assert inputs.shape == targets.shape
    n = inputs.size
    assert n > 0

    if num_cores is None:
        num_cores = _default_num_cores()

    x_flat = inputs.reshape(-1)
    t_flat = targets.reshape(-1)

    rows_total = n // LANES
    use_kernel = rows_total >= 8           # tiny inputs: plain XLA is enough
    n_main = rows_total * LANES if use_kernel else 0

    # Non-lane-aligned tail (< 128 elements) — negligible work, done in XLA.
    if n_main < n:
        xt = x_flat[n_main:].astype(jnp.float32)
        tt = t_flat[n_main:].astype(jnp.float32)
        pt_t, ppt_t, bce_t = _elementwise(xt, tt)
        tail = jnp.stack([pt_t.sum(), ppt_t.sum(), bce_t.sum()])
    else:
        tail = jnp.zeros((3,), jnp.float32)

    if not use_kernel:
        sums = tail
    else:
        if n_main < n:
            # NOTE: only for non-128-aligned flat sizes; the prefix slice copies
            # once (the 2-D lane-dense layout needs a 128-divisible size).
            x_main, t_main = x_flat[:n_main], t_flat[:n_main]
        else:
            x_main, t_main = x_flat, t_flat
        x2 = x_main.reshape(rows_total, LANES)
        t2 = t_main.reshape(rows_total, LANES)

        # Block rows: multiple of 8 sublanes, never larger than the array, and a
        # multiple of the inner sub-chunk when big enough.
        block_rows = max(8, (int(block_rows) // 8) * 8)
        br = min(block_rows, (rows_total // 8) * 8)
        if br >= SUB_CHUNK:
            br = (br // SUB_CHUNK) * SUB_CHUNK
            chunk = SUB_CHUNK
        else:
            chunk = br

        needed_blocks = pl.cdiv(rows_total, br)
        nc = max(1, min(num_cores, needed_blocks))
        spc = pl.cdiv(needed_blocks, nc)
        needs_mask = (nc * spc * br != rows_total)

        last_block = needed_blocks - 1
        if nc * spc > needed_blocks:
            # Some trailing blocks are fully out of range: clamp their block
            # index (data is re-read but fully masked to zero contribution).
            def in_map(c, j):
                return (jnp.minimum(c * spc + j, last_block), 0)
        else:
            def in_map(c, j):
                return (c * spc + j, 0)

        kernel = functools.partial(
            _dice_bce_kernel,
            rows_total=rows_total, steps_per_core=spc, block_rows=br,
            chunk=chunk, needs_mask=needs_mask)

        partials = pl.pallas_call(
            kernel,
            out_shape=jax.ShapeDtypeStruct((nc, 3, 8, LANES), jnp.float32),
            grid_spec=pltpu.PrefetchScalarGridSpec(
                num_scalar_prefetch=0,
                grid=(nc, spc),
                in_specs=[
                    pl.BlockSpec((br, LANES), in_map),
                    pl.BlockSpec((br, LANES), in_map),
                ],
                out_specs=pl.BlockSpec((1, 3, 8, LANES),
                                       lambda c, j: (c, 0, 0, 0)),
            ),
            compiler_params=pltpu.CompilerParams(
                dimension_semantics=("parallel", "arbitrary"),
            ),
        )(x2, t2)

        sums = jnp.sum(partials, axis=(0, 2, 3)) + tail   # (3,)

    sum_pt, intersection, sum_bce = sums[0], sums[1], sums[2]
    dice_loss = 1.0 - (2.0 * intersection + smooth) / (sum_pt + smooth)
    bce_mean = sum_bce / float(n)
    return (bce_mean + dice_loss).astype(jnp.float32)


def _reference(inputs, targets, smooth=1.0):
    x = inputs.astype(jnp.float32)
    t = targets.astype(jnp.float32)
    p = jax.nn.sigmoid(x)
    inter = jnp.sum(p * t)
    dice = 1.0 - (2.0 * inter + smooth) / (jnp.sum(p) + jnp.sum(t) + smooth)
    bce = jnp.mean(jnp.maximum(x, 0.0) - x * t + jnp.log1p(jnp.exp(-jnp.abs(x))))
    return bce + dice


if __name__ == "__main__":
    key = jax.random.PRNGKey(0)
    k1, k2, k3, k4, k5, k6 = jax.random.split(key, 6)

    # 1) Main example: NCHW logits + binary masks, lane-aligned (no tail).
    B, C, H, W = 2, 4, 16, 16
    x1 = jax.random.normal(k1, (B, C, H, W), dtype=jnp.float32)
    t1 = (jax.random.uniform(k2, (B, C, H, W)) > 0.5).astype(jnp.float32)
    l1 = jax.block_until_ready(dice_bce_loss(x1, t1, smooth=1.0))
    r1 = _reference(x1, t1, smooth=1.0)
    assert jnp.allclose(l1, r1, rtol=1e-5, atol=1e-5), (l1, r1)

    # 2) Odd size: exercises the non-lane-aligned XLA tail + in-kernel row mask.
    x2 = jax.random.normal(k3, (2, 3, 33, 33), dtype=jnp.float32)
    t2 = (jax.random.uniform(k4, (2, 3, 33, 33)) > 0.5).astype(jnp.float32)
    l2 = jax.block_until_ready(dice_bce_loss(x2, t2, smooth=1.0))
    r2 = _reference(x2, t2, smooth=1.0)
    assert jnp.allclose(l2, r2, rtol=1e-5, atol=1e-5), (l2, r2)

    # 3) bf16 streaming, multi-block grid, forced 2-way core split with a
    #    partial block and one fully out-of-range (clamped + masked) block.
    x3 = jax.random.normal(k5, (2, 3, 80, 80), dtype=jnp.bfloat16)
    t3 = (jax.random.uniform(k6, (2, 3, 80, 80)) > 0.5).astype(jnp.bfloat16)
    l3 = jax.block_until_ready(
        dice_bce_loss(x3, t3, smooth=1.0, block_rows=128, num_cores=2))
    r3 = _reference(x3, t3, smooth=1.0)
    assert jnp.allclose(l3, r3, rtol=1e-5, atol=1e-5), (l3, r3)

    print("KERNEL_OK")
</pallas_src>

<mosaic_0001>
module attributes {stable_mosaic.version = 11 : i64} {
  func.func @_dice_bce_kernel(%arg0: i32, %arg1: i32, %arg2: memref<16x128xf32, #tpu.memory_space<vmem>>, %arg3: memref<16x128xf32, #tpu.memory_space<vmem>>, %arg4: memref<1x3x8x128xf32, #tpu.memory_space<vmem>>) attributes {dimension_semantics = [#tpu.dimension_semantics<parallel>, #tpu.dimension_semantics<arbitrary>], iteration_bounds = array<i64: 1, 1>, scalar_prefetch = 0 : i64, scratch_operands = 0 : i64, tpu.core_type = #tpu.core_type<tc>, window_params = [{transform_indices = @transform_0, window_bounds = array<i64: 16, 128>}, {transform_indices = @transform_1, window_bounds = array<i64: 16, 128>}, {transform_indices = @transform_2, window_bounds = array<i64: 1, 3, 8, 128>}]} {
    %c0_i32 = arith.constant 0 : i32
    %0 = arith.cmpi eq, %arg1, %c0_i32 : i32
    %1 = arith.extui %0 : i1 to i32
    %c0_i32_0 = arith.constant 0 : i32
    %2 = arith.cmpi ne, %1, %c0_i32_0 : i32
    scf.if %2 {
      %cst_33 = arith.constant 0.000000e+00 : f32
      %57 = vector.broadcast %cst_33 : f32 to vector<1x3x8x128xf32>
      %c0_34 = arith.constant 0 : index
      %c0_35 = arith.constant 0 : index
      %c0_36 = arith.constant 0 : index
      %c0_37 = arith.constant 0 : index
      %58 = vector.load %arg4[%c0_34, %c0_35, %c0_36, %c0_37] : memref<1x3x8x128xf32, #tpu.memory_space<vmem>>, vector<1x3x8x128xf32>
      tpu.vector_store %arg4[%c0_34, %c0_35, %c0_36, %c0_37], %57 {strides = array<i32>} : memref<1x3x8x128xf32, #tpu.memory_space<vmem>>, vector<1x3x8x128xf32>,
    } else {
    }
    %cst = arith.constant 0.000000e+00 : f32
    %3 = vector.broadcast %cst : f32 to vector<8x128xf32>
    %c0_i32_1 = arith.constant 0 : i32
    %c16_i32 = arith.constant 16 : i32
    %4 = arith.muli %c0_i32_1, %c16_i32 : i32
    %5 = tpu.assume_multiple %4, 16 : i32
    %6 = arith.index_cast %5 : i32 to index
    %c0 = arith.constant 0 : index
    %7 = vector.load %arg2[%6, %c0] : memref<16x128xf32, #tpu.memory_space<vmem>>, vector<16x128xf32>
    %8 = arith.index_cast %5 : i32 to index
    %c0_2 = arith.constant 0 : index
    %9 = vector.load %arg3[%8, %c0_2] : memref<16x128xf32, #tpu.memory_space<vmem>>, vector<16x128xf32>
    %10 = math.absf %7 : vector<16x128xf32>
    %cst_3 = arith.constant 0.000000e+00 : f32
    %11 = vector.broadcast %cst_3 : f32 to vector<16x128xf32>
    %12 = arith.subf %11, %10 : vector<16x128xf32>
    %13 = math.exp %12 : vector<16x128xf32>
    %cst_4 = arith.constant 1.000000e+00 : f32
    %14 = vector.broadcast %cst_4 : f32 to vector<16x128xf32>
    %15 = arith.addf %14, %13 : vector<16x128xf32>
    %cst_5 = arith.constant 1.000000e+00 : f32
    %16 = vector.broadcast %cst_5 : f32 to vector<16x128xf32>
    %17 = arith.divf %16, %15 : vector<16x128xf32>
    %cst_6 = arith.constant 0.000000e+00 : f32
    %18 = vector.broadcast %cst_6 : f32 to vector<16x128xf32>
    %19 = arith.cmpf oge, %7, %18 : vector<16x128xf32>
    %20 = arith.mulf %13, %17 : vector<16x128xf32>
    %21 = arith.select %19, %17, %20 : vector<16x128xi1>, vector<16x128xf32>
    %cst_7 = arith.constant 0.000000e+00 : f32
    %22 = vector.broadcast %cst_7 : f32 to vector<16x128xf32>
    %23 = arith.maximumf %7, %22 : vector<16x128xf32>
    %24 = arith.mulf %7, %9 : vector<16x128xf32>
    %25 = arith.subf %23, %24 : vector<16x128xf32>
    %26 = math.log1p %13 : vector<16x128xf32>
    %27 = arith.addf %25, %26 : vector<16x128xf32>
    %28 = arith.addf %21, %9 : vector<16x128xf32>
    %29 = arith.mulf %21, %9 : vector<16x128xf32>
    %30 = vector.shape_cast %28 : vector<16x128xf32> to vector<2x8x128xf32>
    %cst_8 = arith.constant dense<0.000000e+00> : vector<8x128xf32>
    %31 = vector.multi_reduction <add>, %30, %cst_8 [0] : vector<2x8x128xf32> to vector<8x128xf32>
    %32 = arith.addf %3, %31 : vector<8x128xf32>
    %33 = vector.shape_cast %29 : vector<16x128xf32> to vector<2x8x128xf32>
    %cst_9 = arith.constant dense<0.000000e+00> : vector<8x128xf32>
    %34 = vector.multi_reduction <add>, %33, %cst_9 [0] : vector<2x8x128xf32> to vector<8x128xf32>
    %35 = arith.addf %3, %34 : vector<8x128xf32>
    %36 = vector.shape_cast %27 : vector<16x128xf32> to vector<2x8x128xf32>
    %cst_10 = arith.constant dense<0.000000e+00> : vector<8x128xf32>
    %37 = vector.multi_reduction <add>, %36, %cst_10 [0] : vector<2x8x128xf32> to vector<8x128xf32>
    %38 = arith.addf %3, %37 : vector<8x128xf32>
    %c1_i32 = arith.constant 1 : i32
    %c0_11 = arith.constant 0 : index
    %c0_12 = arith.constant 0 : index
    %c0_13 = arith.constant 0 : index
    %c0_14 = arith.constant 0 : index
    %39 = vector.load %arg4[%c0_11, %c0_12, %c0_13, %c0_14] : memref<1x3x8x128xf32, #tpu.memory_space<vmem>>, vector<1x1x8x128xf32>
    %40 = vector.shape_cast %39 : vector<1x1x8x128xf32> to vector<8x128xf32>
    %41 = arith.addf %40, %32 : vector<8x128xf32>
    %c0_15 = arith.constant 0 : index
    %c0_16 = arith.constant 0 : index
    %c0_17 = arith.constant 0 : index
    %c0_18 = arith.constant 0 : index
    %42 = vector.load %arg4[%c0_15, %c0_16, %c0_17, %c0_18] : memref<1x3x8x128xf32, #tpu.memory_space<vmem>>, vector<1x1x8x128xf32>
    %43 = vector.shape_cast %42 : vector<1x1x8x128xf32> to vector<8x128xf32>
    %44 = vector.shape_cast %41 : vector<8x128xf32> to vector<1x1x8x128xf32>
    tpu.vector_store %arg4[%c0_15, %c0_16, %c0_17, %c0_18], %44 {strides = array<i32>} : memref<1x3x8x128xf32, #tpu.memory_space<vmem>>, vector<1x1x8x128xf32>,
    %c0_19 = arith.constant 0 : index
    %c1 = arith.constant 1 : index
    %c0_20 = arith.constant 0 : index
    %c0_21 = arith.constant 0 : index
    %45 = vector.load %arg4[%c0_19, %c1, %c0_20, %c0_21] : memref<1x3x8x128xf32, #tpu.memory_space<vmem>>, vector<1x1x8x128xf32>
    %46 = vector.shape_cast %45 : vector<1x1x8x128xf32> to vector<8x128xf32>
    %47 = arith.addf %46, %35 : vector<8x128xf32>
    %c0_22 = arith.constant 0 : index
    %c1_23 = arith.constant 1 : index
    %c0_24 = arith.constant 0 : index
    %c0_25 = arith.constant 0 : index
    %48 = vector.load %arg4[%c0_22, %c1_23, %c0_24, %c0_25] : memref<1x3x8x128xf32, #tpu.memory_space<vmem>>, vector<1x1x8x128xf32>
    %49 = vector.shape_cast %48 : vector<1x1x8x128xf32> to vector<8x128xf32>
    %50 = vector.shape_cast %47 : vector<8x128xf32> to vector<1x1x8x128xf32>
    tpu.vector_store %arg4[%c0_22, %c1_23, %c0_24, %c0_25], %50 {strides = array<i32>} : memref<1x3x8x128xf32, #tpu.memory_space<vmem>>, vector<1x1x8x128xf32>,
    %c0_26 = arith.constant 0 : index
    %c2 = arith.constant 2 : index
    %c0_27 = arith.constant 0 : index
    %c0_28 = arith.constant 0 : index
    %51 = vector.load %arg4[%c0_26, %c2, %c0_27, %c0_28] : memref<1x3x8x128xf32, #tpu.memory_space<vmem>>, vector<1x1x8x128xf32>
    %52 = vector.shape_cast %51 : vector<1x1x8x128xf32> to vector<8x128xf32>
    %53 = arith.addf %52, %38 : vector<8x128xf32>
    %c0_29 = arith.constant 0 : index
    %c2_30 = arith.constant 2 : index
    %c0_31 = arith.constant 0 : index
    %c0_32 = arith.constant 0 : index
    %54 = vector.load %arg4[%c0_29, %c2_30, %c0_31, %c0_32] : memref<1x3x8x128xf32, #tpu.memory_space<vmem>>, vector<1x1x8x128xf32>
    %55 = vector.shape_cast %54 : vector<1x1x8x128xf32> to vector<8x128xf32>
    %56 = vector.shape_cast %53 : vector<8x128xf32> to vector<1x1x8x128xf32>
    tpu.vector_store %arg4[%c0_29, %c2_30, %c0_31, %c0_32], %56 {strides = array<i32>} : memref<1x3x8x128xf32, #tpu.memory_space<vmem>>, vector<1x1x8x128xf32>,
    return
  }
  func.func @transform_0(%arg0: i32, %arg1: i32) -> (i32, i32) {
    %c1_i32 = arith.constant 1 : i32
    %0 = arith.muli %arg0, %c1_i32 : i32
    %1 = arith.addi %0, %arg1 : i32
    %c0_i32 = arith.constant 0 : i32
    %c0_i32_0 = arith.constant 0 : i32
    return %1, %c0_i32 : i32, i32
  }
  func.func @transform_1(%arg0: i32, %arg1: i32) -> (i32, i32) {
    %c1_i32 = arith.constant 1 : i32
    %0 = arith.muli %arg0, %c1_i32 : i32
    %1 = arith.addi %0, %arg1 : i32
    %c0_i32 = arith.constant 0 : i32
    %c0_i32_0 = arith.constant 0 : i32
    return %1, %c0_i32 : i32, i32
  }
  func.func @transform_2(%arg0: i32, %arg1: i32) -> (i32, i32, i32, i32) {
    %c0_i32 = arith.constant 0 : i32
    %c0_i32_0 = arith.constant 0 : i32
    %c0_i32_1 = arith.constant 0 : i32
    %c0_i32_2 = arith.constant 0 : i32
    return %arg0, %c0_i32, %c0_i32_0, %c0_i32_1 : i32, i32, i32, i32
  }
}

</mosaic_0001>

<llo_original>
// kernel: tpu_custom_call.1
$region0: #{tpu_custom_call.1}
  #allocation0 [shape = 'u32[]', space=smem, size = 0x4, offset = 0x4, fixed_abs, tag = 'smem constant byte address 0x4 - core index']
  #allocation1 [shape = 'u32[144,128]{1,0:T(1,128)}', space=vmem, size = 0x12000, scoped, tag = 'internal scratch']
  %s0 = inlined_call_operand.hbm [shape: f32[16,128], index: 0, kind: input, shape index: {}]
  %s1 = inlined_call_operand.hbm [shape: f32[16,128], index: 1, kind: input, shape index: {}]
  %s2 = inlined_call_operand.hbm [shape: f32[1,3,8,128], index: 2, kind: output, shape index: {}]
  %s3 = sld [smem:[#allocation0]]
  $region30: #{tpu_custom_call.1} parent=0
    _
  %s5 = ssub.s32 1, %s3
  %s6 = scalar_select 0, %s5, %s3
  $region1: #{tpu_custom_call.1} parent=0
    #allocation2 [shape = 'u8[8192]{0}', space=vmem, size = 0x2000, scoped, tag = 'input window, operand 0, single buffered']
    #allocation3 [shape = 's32[1]{0}', space=sflag, size = 0x4, scoped, tag = 'scoped memory for tpu_custom_call.1']
    #allocation4 [shape = 's32[1]{0}', space=sflag, size = 0x4, scoped, tag = 'scoped memory for tpu_custom_call.1']
    #allocation5 [shape = 'u8[8192]{0}', space=vmem, size = 0x2000, scoped, tag = 'input window, operand 1, single buffered']
    #allocation6 [shape = 's32[1]{0}', space=sflag, size = 0x4, scoped, tag = 'scoped memory for tpu_custom_call.1']
    #allocation7 [shape = 'u8[12288]{0}', space=vmem, size = 0x3000, scoped, tag = 'output window, operand 0, single buffered']
    %7 = vsyncpa [#allocation3], 0
    %8 = vsyncpa [#allocation6], 0
    %9 = vsyncpa [#allocation4], 0
    // Predicated region
    $region2: #{tpu_custom_call.1} parent=1 // pred_check
      _
    $region3: #{tpu_custom_call.1} parent=1 // pred_check_branch
      %11 = sbr.rel (0) target = $region5
    $region4: #{tpu_custom_call.1} parent=1 // pred_region
      %s12 = sadd.s32 0, 0
      %s13 = smul.u32 2, %s12
      %s15 = ssub.s32 256, 256
      %16 = vsyncadd [#allocation3], %s15
      %s17 = smul.addr %s13, 128
      %s18 = scalar_lea.hbm %s0, %s17
      %s19 = sshll.u32 [#allocation2], 4
      %s20 = int_to_ptr.vmem [resolvable:$true] %s19
      %25 = dma.hbm_to_vmem [thread:$0]  %s18, 256, %s20, [#allocation3], 128, 128, 8
    $region5: #{tpu_custom_call.1} parent=1 // pred_fallthru
      _
    // Predicated region
    $region6: #{tpu_custom_call.1} parent=1 // pred_check
      _
    $region7: #{tpu_custom_call.1} parent=1 // pred_check_branch
      %27 = sbr.rel (0) target = $region9
    $region8: #{tpu_custom_call.1} parent=1 // pred_region
      %s28 = sadd.s32 0, 0
      %s29 = smul.u32 2, %s28
      %s31 = ssub.s32 256, 256
      %32 = vsyncadd [#allocation6], %s31
      %s33 = smul.addr %s29, 128
      %s34 = scalar_lea.hbm %s1, %s33
      %s35 = sshll.u32 [#allocation5], 4
      %s36 = int_to_ptr.vmem [resolvable:$true] %s35
      %41 = dma.hbm_to_vmem [thread:$0]  %s34, 256, %s36, [#allocation6], 128, 128, 8
    $region9: #{tpu_custom_call.1} parent=1 // pred_fallthru
      _
    // Predicated region
    $region10: #{tpu_custom_call.1} parent=1 // pred_check
      _
    $region11: #{tpu_custom_call.1} parent=1 // pred_check_branch
      %43 = sbr.rel (0) target = $region13
    $region12: #{tpu_custom_call.1} parent=1 // pred_region
      %44 = dma.done [#allocation3], 256
    $region13: #{tpu_custom_call.1} parent=1 // pred_fallthru
      _
    // Predicated region
    $region14: #{tpu_custom_call.1} parent=1 // pred_check
      _
    $region15: #{tpu_custom_call.1} parent=1 // pred_check_branch
      %46 = sbr.rel (0) target = $region17
    $region16: #{tpu_custom_call.1} parent=1 // pred_region
      %47 = dma.done [#allocation6], 256
    $region17: #{tpu_custom_call.1} parent=1 // pred_fallthru
      _
    %s48 = sadd.s32 0, 0
    %s49 = smul.u32 2, %s48
    %s50 = sadd.s32 0, 0
    %s51 = smul.u32 2, %s50
    %p52 = scmp.eq.s32.totalorder 0, 0
    // Predicated region
    $region18: #{tpu_custom_call.1} parent=1 // pred_check
      %p53 = pneg %p52
    $region19: #{tpu_custom_call.1} parent=1 // pred_check_branch
      %55 = sbr.rel (%p53) target = $region21
    $region20: #{tpu_custom_call.1} parent=1 // pred_region
      %56 = vst [vmem:[#allocation7] sm:$0xff] 0.0
      %57 = vst [vmem:[#allocation7 + $0x8] sm:$0xff] 0.0
      %58 = vst [vmem:[#allocation7 + $0x10] sm:$0xff] 0.0
    $region21: #{tpu_custom_call.1} parent=1 // pred_fallthru
      _
    %v59 = vld [vmem:[#allocation2] sm:$0xff]
    %v60 = vld [vmem:[#allocation2 + $0x8] sm:$0xff]
    %v61 = vld [vmem:[#allocation5] sm:$0xff]
    %v62 = vld [vmem:[#allocation5 + $0x8] sm:$0xff]
    %v63 = vand.u32 2147483647, %v59
    %v64 = vand.u32 2147483647, %v60
    %v65 = vsub.f32 0.0, %v63
    %v66 = vsub.f32 0.0, %v64
    %v67 = vmul.f32 %v65, 1.442695
    %v68 = vpow.pop %v67
    %v69 = vmul.f32 %v66, 1.442695
    %v70 = vpow.pop %v69
    %v71 = vadd.f32 %v68, 1.0
    %v72 = vadd.f32 %v70, 1.0
    %v73 = vrcp.pop %v71
    %v74 = vmul.f32 1.0, %v73
    %v75 = vrcp.pop %v72
    %v76 = vmul.f32 1.0, %v75
    %vm77 = vcmp.ge.f32.partialorder %v59, 0.0
    %vm78 = vcmp.ge.f32.partialorder %v60, 0.0
    %v79 = vmul.f32 %v68, %v74
    %v80 = vmul.f32 %v70, %v76
    %v81 = vsel %vm77, %v74, %v79
    %v82 = vsel %vm78, %v76, %v80
    %v83 = vmax.f32 %v59, 0.0
    %v84 = vmax.f32 %v60, 0.0
    %v85 = vmul.f32 %v59, %v61
    %v86 = vmul.f32 %v60, %v62
    %v87 = vsub.f32 %v83, %v85
    %v88 = vsub.f32 %v84, %v86
    %v89 = vadd.f32 %v68, 1.0
    %v90 = vlog2.pop %v89
    %v91 = vmul.f32 %v90, 0.6931472
    %v92 = vmul.f32 -0.5, %v68
    %v93 = vadd.f32 %v92, 1.0
    %v94 = vmul.f32 %v93, %v68
    %v95 = vand.u32 2147483647, %v68
    %vm96 = vcmp.lt.f32.partialorder %v95, 0.0004427343
    %v97 = vsel %vm96, %v94, %v91
    %v98 = vadd.f32 %v70, 1.0
    %v99 = vlog2.pop %v98
    %v100 = vmul.f32 %v99, 0.6931472
    %v101 = vmul.f32 -0.5, %v70
    %v102 = vadd.f32 %v101, 1.0
    %v103 = vmul.f32 %v102, %v70
    %v104 = vand.u32 2147483647, %v70
    %vm105 = vcmp.lt.f32.partialorder %v104, 0.0004427343
    %v106 = vsel %vm105, %v103, %v100
    %v107 = vadd.f32 %v87, %v97
    %v108 = vadd.f32 %v88, %v106
    %v109 = vadd.f32 %v81, %v61
    %v110 = vadd.f32 %v82, %v62
    %v111 = vmul.f32 %v81, %v61
    %v112 = vmul.f32 %v82, %v62
    %v113 = vadd.f32 %v109, %v110
    %v114 = vadd.f32 %v113, 0.0
    %v115 = vadd.f32 %v111, %v112
    %v116 = vadd.f32 %v115, 0.0
    %v117 = vadd.f32 %v107, %v108
    %v118 = vadd.f32 %v117, 0.0
    %v119 = vld [vmem:[#allocation7] sm:$0xff]
    %v120 = vadd.f32 %v119, %v114
    %121 = vst [vmem:[#allocation7] sm:$0xff] %v120
    %s122 = scalar_lea.vmem [#allocation7], 8
    %v123 = vld [vmem:[%s122] sm:$0xff]
    %v124 = vadd.f32 %v123, %v116
    %125 = vst [vmem:[%s122] sm:$0xff] %v124
    %s126 = scalar_lea.vmem [#allocation7], 16
    %v127 = vld [vmem:[%s126] sm:$0xff]
    %v128 = vadd.f32 %v127, %v118
    %129 = vst [vmem:[%s126] sm:$0xff] %v128
    // Predicated region
    $region22: #{tpu_custom_call.1} parent=1 // pred_check
      _
    $region23: #{tpu_custom_call.1} parent=1 // pred_check_branch
      %131 = sbr.rel (0) target = $region25
    $region24: #{tpu_custom_call.1} parent=1 // pred_region
      %s133 = ssub.s32 384, 384
      %134 = vsyncadd [#allocation4], %s133
      %s135 = sshll.u32 [#allocation7], 4
      %s136 = int_to_ptr.vmem [resolvable:$true] %s135
      %141 = dma.vmem_to_hbm [thread:$0]  %s136, 384, %s2, [#allocation4], 128, 128, 8
    $region25: #{tpu_custom_call.1} parent=1 // pred_fallthru
      _
    // Predicated region
    $region26: #{tpu_custom_call.1} parent=1 // pred_check
      _
    $region27: #{tpu_custom_call.1} parent=1 // pred_check_branch
      %143 = sbr.rel (0) target = $region29
    $region28: #{tpu_custom_call.1} parent=1 // pred_region
      %144 = dma.done [#allocation4], 384
    $region29: #{tpu_custom_call.1} parent=1 // pred_fallthru
      _
    %145 = vsyncpa [#allocation3], 1
    %146 = vsyncpa [#allocation6], 1
    %147 = vsyncpa [#allocation4], 1

</llo_original>
